<compile_context>
chip_gen: v7x
topology: tpu7x:2x2x1
jax: 0.10.0
libtpu: 0.0.40
codegen_flags: <defaults>
</compile_context>

<pallas_src>
import functools

import jax
import jax.numpy as jnp
from jax.experimental import pallas as pl
from jax.experimental.pallas import tpu as pltpu


def txtnet_kernel(x_ref, w1_ref, b1_ref, w2_ref, b2_ref, o_ref):
    # Hidden layer: (TM, 11) @ (11, 100) + (1, 100), ReLU.
    h = jnp.dot(x_ref[...], w1_ref[...], preferred_element_type=jnp.float32)
    h = jnp.maximum(h + b1_ref[...], 0.0)

    # Output layer: (TM, 100) @ (100, 2) + (1, 2).
    logits = jnp.dot(h, w2_ref[...], preferred_element_type=jnp.float32)
    logits = logits + b2_ref[...]

    # 2-class softmax in closed form: p1 = sigmoid(l1 - l0), p0 = 1 - p1.
    # Numerically stable split on the sign of d; purely elementwise
    # (no XLU axis reductions, no reciprocal op).
    d = logits[:, 1:2] - logits[:, 0:1]           # (TM, 1)
    e = jnp.exp(-jnp.abs(d))                      # in (0, 1], never overflows
    denom = 1.0 + e
    p_hi = 1.0 / denom                            # prob of the larger logit
    p_lo = e / denom                              # prob of the smaller logit
    p1 = jnp.where(d >= 0.0, p_hi, p_lo)
    p0 = 1.0 - p1
    o_ref[...] = jnp.concatenate([p0, p1], axis=-1).astype(o_ref.dtype)


def _round_up(n, m):
    return pl.cdiv(n, m) * m


@functools.partial(jax.jit, static_argnames=("tm",))
def txtnet_forward(x, w1, b1, w2, b2, *, tm=512):
    B, K = x.shape
    H = w1.shape[1]
    C = w2.shape[1]

    # Batch tile: multiple of 8 sublanes, clamped for tiny batches.
    TM = min(tm, _round_up(B, 8))
    Bp = _round_up(B, TM)
    if Bp != B:
        x = jnp.pad(x, ((0, Bp - B), (0, 0)))     # padded rows discarded below

    out = pl.pallas_call(
        txtnet_kernel,
        out_shape=jax.ShapeDtypeStruct((Bp, C), jnp.float32),
        grid=(Bp // TM,),
        in_specs=[
            # Batch-tiled input; weights/biases use constant index maps so
            # they stay resident in VMEM across grid iterations.
            pl.BlockSpec((TM, K), lambda i: (i, 0)),
            pl.BlockSpec((K, H), lambda i: (0, 0)),
            pl.BlockSpec((1, H), lambda i: (0, 0)),
            pl.BlockSpec((H, C), lambda i: (0, 0)),
            pl.BlockSpec((1, C), lambda i: (0, 0)),
        ],
        out_specs=pl.BlockSpec((TM, C), lambda i: (i, 0)),
        compiler_params=pltpu.CompilerParams(
            dimension_semantics=("parallel",),    # shard batch across TCs (v7x)
        ),
    )(x, w1, b1, w2, b2)
    return out[:B]


def init_params(key):
    # Deterministic synthetic init (shapes from TxtNet.__init__).
    k1, k2, k3, k4 = jax.random.split(key, 4)
    # PyTorch nn.Linear default init: U(-1/sqrt(fan_in), 1/sqrt(fan_in)).
    bound1 = 1.0 / jnp.sqrt(11.0)
    bound2 = 1.0 / jnp.sqrt(100.0)
    w1 = jax.random.uniform(k1, (11, 100), jnp.float32, -bound1, bound1)
    b1 = jax.random.uniform(k2, (1, 100), jnp.float32, -bound1, bound1)
    w2 = jax.random.uniform(k3, (100, 2), jnp.float32, -bound2, bound2)
    b2 = jax.random.uniform(k4, (1, 2), jnp.float32, -bound2, bound2)
    return w1, b1, w2, b2


def _ref_forward(x, w1, b1, w2, b2):
    # Plain-JAX reference, same semantics as the PyTorch forward.
    h = jnp.maximum(x @ w1 + b1, 0.0)
    return jax.nn.softmax(h @ w2 + b2, axis=-1)


if __name__ == "__main__":
    key = jax.random.PRNGKey(0)
    kx, kp, kx2 = jax.random.split(key, 3)

    w1, b1, w2, b2 = init_params(kp)

    # Small batch (single grid step, block == full array).
    B = 8
    x = jax.random.normal(kx, (B, 11), jnp.float32)
    out = jax.block_until_ready(txtnet_forward(x, w1, b1, w2, b2))
    ref = _ref_forward(x, w1, b1, w2, b2)
    assert out.shape == (B, 2)
    assert jnp.allclose(out, ref, atol=1e-5, rtol=1e-5)
    assert jnp.allclose(jnp.sum(out, axis=-1), 1.0, atol=1e-5)

    # Larger batch exercising the batch grid + partial-tile padding path.
    B2 = 300
    x2 = jax.random.normal(kx2, (B2, 11), jnp.float32)
    out2 = jax.block_until_ready(txtnet_forward(x2, w1, b1, w2, b2, tm=128))
    ref2 = _ref_forward(x2, w1, b1, w2, b2)
    assert out2.shape == (B2, 2)
    assert jnp.allclose(out2, ref2, atol=1e-5, rtol=1e-5)
    assert jnp.allclose(jnp.sum(out2, axis=-1), 1.0, atol=1e-5)

    print("KERNEL_OK")
</pallas_src>

<mosaic_0001>
module attributes {stable_mosaic.version = 11 : i64} {
  func.func @txtnet_kernel(%arg0: i32, %arg1: memref<8x11xf32, #tpu.memory_space<vmem>>, %arg2: memref<11x100xf32, #tpu.memory_space<vmem>>, %arg3: memref<1x100xf32, #tpu.memory_space<vmem>>, %arg4: memref<100x2xf32, #tpu.memory_space<vmem>>, %arg5: memref<1x2xf32, #tpu.memory_space<vmem>>, %arg6: memref<8x2xf32, #tpu.memory_space<vmem>>) attributes {dimension_semantics = [#tpu.dimension_semantics<parallel>], iteration_bounds = array<i64: 1>, scalar_prefetch = 0 : i64, scratch_operands = 0 : i64, tpu.core_type = #tpu.core_type<tc>, window_params = [{transform_indices = @transform_0, window_bounds = array<i64: 8, 11>}, {pipeline_mode = #tpu.pipeline_mode<synchronous>, transform_indices = @transform_1, window_bounds = array<i64: 11, 100>}, {pipeline_mode = #tpu.pipeline_mode<synchronous>, transform_indices = @transform_2, window_bounds = array<i64: 1, 100>}, {pipeline_mode = #tpu.pipeline_mode<synchronous>, transform_indices = @transform_3, window_bounds = array<i64: 100, 2>}, {pipeline_mode = #tpu.pipeline_mode<synchronous>, transform_indices = @transform_4, window_bounds = array<i64: 1, 2>}, {transform_indices = @transform_5, window_bounds = array<i64: 8, 2>}]} {
    %c0 = arith.constant 0 : index
    %c0_0 = arith.constant 0 : index
    %0 = vector.load %arg1[%c0, %c0_0] : memref<8x11xf32, #tpu.memory_space<vmem>>, vector<8x11xf32>
    %c0_1 = arith.constant 0 : index
    %c0_2 = arith.constant 0 : index
    %1 = vector.load %arg2[%c0_1, %c0_2] : memref<11x100xf32, #tpu.memory_space<vmem>>, vector<11x100xf32>
    %cst = arith.constant dense<0.000000e+00> : vector<8x100xf32>
    %2 = tpu.matmul %0, %1, %cst {dimension_numbers = #tpu.dot_dimension_numbers<[1], [0], [0], [1], [0, 0, 1, 1], [], []>} : vector<8x11xf32>, vector<11x100xf32>, vector<8x100xf32> -> vector<8x100xf32>
    %c0_3 = arith.constant 0 : index
    %c0_4 = arith.constant 0 : index
    %3 = vector.load %arg3[%c0_3, %c0_4] : memref<1x100xf32, #tpu.memory_space<vmem>>, vector<1x100xf32>
    %4 = vector.broadcast %3 : vector<1x100xf32> to vector<8x100xf32>
    %5 = arith.addf %2, %4 : vector<8x100xf32>
    %cst_5 = arith.constant 0.000000e+00 : f32
    %6 = vector.broadcast %cst_5 : f32 to vector<8x100xf32>
    %7 = arith.maximumf %5, %6 : vector<8x100xf32>
    %c0_6 = arith.constant 0 : index
    %c0_7 = arith.constant 0 : index
    %8 = vector.load %arg4[%c0_6, %c0_7] : memref<100x2xf32, #tpu.memory_space<vmem>>, vector<100x2xf32>
    %cst_8 = arith.constant dense<0.000000e+00> : vector<8x2xf32>
    %9 = tpu.matmul %7, %8, %cst_8 {dimension_numbers = #tpu.dot_dimension_numbers<[1], [0], [0], [1], [0, 0, 1, 1], [], []>} : vector<8x100xf32>, vector<100x2xf32>, vector<8x2xf32> -> vector<8x2xf32>
    %c0_9 = arith.constant 0 : index
    %c0_10 = arith.constant 0 : index
    %10 = vector.load %arg5[%c0_9, %c0_10] : memref<1x2xf32, #tpu.memory_space<vmem>>, vector<1x2xf32>
    %11 = vector.broadcast %10 : vector<1x2xf32> to vector<8x2xf32>
    %12 = arith.addf %9, %11 : vector<8x2xf32>
    %13 = vector.extract_strided_slice %12 {offsets = [0, 1], sizes = [8, 1], strides = [1, 1]} : vector<8x2xf32> to vector<8x1xf32>
    %14 = vector.extract_strided_slice %12 {offsets = [0, 0], sizes = [8, 1], strides = [1, 1]} : vector<8x2xf32> to vector<8x1xf32>
    %15 = arith.subf %13, %14 : vector<8x1xf32>
    %16 = math.absf %15 : vector<8x1xf32>
    %cst_11 = arith.constant 0.000000e+00 : f32
    %17 = vector.broadcast %cst_11 : f32 to vector<8x1xf32>
    %18 = arith.subf %17, %16 : vector<8x1xf32>
    %19 = math.exp %18 : vector<8x1xf32>
    %cst_12 = arith.constant 1.000000e+00 : f32
    %20 = vector.broadcast %cst_12 : f32 to vector<8x1xf32>
    %21 = arith.addf %20, %19 : vector<8x1xf32>
    %cst_13 = arith.constant 1.000000e+00 : f32
    %22 = vector.broadcast %cst_13 : f32 to vector<8x1xf32>
    %23 = arith.divf %22, %21 : vector<8x1xf32>
    %24 = arith.divf %19, %21 : vector<8x1xf32>
    %cst_14 = arith.constant 0.000000e+00 : f32
    %25 = vector.broadcast %cst_14 : f32 to vector<8x1xf32>
    %26 = arith.cmpf oge, %15, %25 : vector<8x1xf32>
    %27 = arith.select %26, %23, %24 : vector<8x1xi1>, vector<8x1xf32>
    %cst_15 = arith.constant 1.000000e+00 : f32
    %28 = vector.broadcast %cst_15 : f32 to vector<8x1xf32>
    %29 = arith.subf %28, %27 : vector<8x1xf32>
    %30 = tpu.concatenate %29, %27 in 1 : vector<8x1xf32>, vector<8x1xf32> -> vector<8x2xf32>
    %c0_16 = arith.constant 0 : index
    %c0_17 = arith.constant 0 : index
    %31 = vector.load %arg6[%c0_16, %c0_17] : memref<8x2xf32, #tpu.memory_space<vmem>>, vector<8x2xf32>
    tpu.vector_store %arg6[%c0_16, %c0_17], %30 {strides = array<i32>} : memref<8x2xf32, #tpu.memory_space<vmem>>, vector<8x2xf32>,
    return
  }
  func.func @transform_0(%arg0: i32) -> (i32, i32) {
    %c0_i32 = arith.constant 0 : i32
    %c0_i32_0 = arith.constant 0 : i32
    return %arg0, %c0_i32 : i32, i32
  }
  func.func @transform_1(%arg0: i32) -> (i32, i32) {
    %c0_i32 = arith.constant 0 : i32
    %c0_i32_0 = arith.constant 0 : i32
    %c0_i32_1 = arith.constant 0 : i32
    return %c0_i32, %c0_i32_0 : i32, i32
  }
  func.func @transform_2(%arg0: i32) -> (i32, i32) {
    %c0_i32 = arith.constant 0 : i32
    %c0_i32_0 = arith.constant 0 : i32
    %c0_i32_1 = arith.constant 0 : i32
    return %c0_i32, %c0_i32_0 : i32, i32
  }
  func.func @transform_3(%arg0: i32) -> (i32, i32) {
    %c0_i32 = arith.constant 0 : i32
    %c0_i32_0 = arith.constant 0 : i32
    %c0_i32_1 = arith.constant 0 : i32
    return %c0_i32, %c0_i32_0 : i32, i32
  }
  func.func @transform_4(%arg0: i32) -> (i32, i32) {
    %c0_i32 = arith.constant 0 : i32
    %c0_i32_0 = arith.constant 0 : i32
    %c0_i32_1 = arith.constant 0 : i32
    return %c0_i32, %c0_i32_0 : i32, i32
  }
  func.func @transform_5(%arg0: i32) -> (i32, i32) {
    %c0_i32 = arith.constant 0 : i32
    %c0_i32_0 = arith.constant 0 : i32
    return %arg0, %c0_i32 : i32, i32
  }
}

</mosaic_0001>

<llo_original>
// kernel: txtnet_forward.1
$region0: #{txtnet_forward.1}
  #allocation0 [shape = 'u32[]', space=smem, size = 0x4, offset = 0x4, fixed_abs, tag = 'smem constant byte address 0x4 - core index']
  #allocation1 [shape = 'u32[144,128]{1,0:T(1,128)}', space=vmem, size = 0x12000, scoped, tag = 'internal scratch']
  %s0 = inlined_call_operand.vmem [shape: f32[8,11], index: 0, kind: input, shape index: {}]
  %s1 = inlined_call_operand.vmem [shape: f32[11,100], index: 1, kind: input, shape index: {}]
  %s2 = inlined_call_operand.vmem [shape: f32[1,100], index: 2, kind: input, shape index: {}]
  %s3 = inlined_call_operand.vmem [shape: f32[100,2], index: 3, kind: input, shape index: {}]
  %s4 = inlined_call_operand.vmem [shape: f32[1,2], index: 4, kind: input, shape index: {}]
  %s5 = inlined_call_operand.vmem [shape: f32[8,2], index: 5, kind: output, shape index: {}]
  %s6 = sld [smem:[#allocation0]]
  $region30: #{txtnet_forward.1} parent=0
    _
  %s8 = ssub.s32 1, %s6
  %s9 = scalar_select 0, %s8, %s6
  // Predicated region
  $region2: #{txtnet_forward.1} parent=0 // pred_check
    _
  $region3: #{txtnet_forward.1} parent=0 // pred_check_branch
    %11 = sbr.rel (0) target = $region5
  $region4: #{txtnet_forward.1} parent=0 // pred_region
    _
  $region5: #{txtnet_forward.1} parent=0 // pred_fallthru
    _
  // Predicated region
  $region6: #{txtnet_forward.1} parent=0 // pred_check
    _
  $region7: #{txtnet_forward.1} parent=0 // pred_check_branch
    %13 = sbr.rel (0) target = $region9
  $region8: #{txtnet_forward.1} parent=0 // pred_region
    _
  $region9: #{txtnet_forward.1} parent=0 // pred_fallthru
    _
  // Predicated region
  $region10: #{txtnet_forward.1} parent=0 // pred_check
    _
  $region11: #{txtnet_forward.1} parent=0 // pred_check_branch
    %15 = sbr.rel (0) target = $region13
  $region12: #{txtnet_forward.1} parent=0 // pred_region
    _
  $region13: #{txtnet_forward.1} parent=0 // pred_fallthru
    _
  // Predicated region
  $region14: #{txtnet_forward.1} parent=0 // pred_check
    _
  $region15: #{txtnet_forward.1} parent=0 // pred_check_branch
    %17 = sbr.rel (0) target = $region17
  $region16: #{txtnet_forward.1} parent=0 // pred_region
    _
  $region17: #{txtnet_forward.1} parent=0 // pred_fallthru
    _
  // Predicated region
  $region18: #{txtnet_forward.1} parent=0 // pred_check
    _
  $region19: #{txtnet_forward.1} parent=0 // pred_check_branch
    %19 = sbr.rel (0) target = $region21
  $region20: #{txtnet_forward.1} parent=0 // pred_region
    _
  $region21: #{txtnet_forward.1} parent=0 // pred_fallthru
    _
  %v20 = vld [vmem:[%s0] sm:$0xff]
  %v21 = vld [vmem:[%s1] sm:$0xff]
  %v22 = vld [vmem:[%s1 + $0x8] sm:$0x7]
  %v23 = vld [vmem:[%s2] sm:$0x1]
  %v25 = vlaneseq
  %v26 = vshrl.u32 %v25, 7
  %v27 = vsub.s32 0, %v26
  %v28 = vrot.slane %v23, %v27
  %vm30 = vcmask 89088
  %v32 = vsel %vm30, %v20, 0
  %vm34 = vcmask 1042432
  %v36 = vsel %vm34, %v22, 0
  %38 = vmatprep.subr.mxu0 0.0
  %39 = vmatpush1.msra.mxu0 %v21
  %40 = vmatprep.subr.mxu0 0.0
  %41 = vmatpush1.msra.mxu0 %v36
  %42 = vmatprep.subr.mxu0 0.0
  %43 = vmatpush1.msra.mxu0 0.0
  %44 = vmatprep.subr.mxu0 0.0
  %45 = vmatpush1.msra.mxu0 0.0
  %46 = vmatprep.subr.mxu0 0.0
  %47 = vmatpush1.msra.mxu0 0.0
  %48 = vmatprep.subr.mxu0 0.0
  %49 = vmatpush1.msra.mxu0 0.0
  %50 = vmatprep.subr.mxu0 0.0
  %51 = vmatpush1.msra.mxu0 0.0
  %52 = vmatprep.subr.mxu0 0.0
  %53 = vmatpush1.msra.mxu0 0.0
  %54 = vmatprep.subr.mxu0 0.0
  %55 = vmatpush1.msra.mxu0 0.0
  %56 = vmatprep.subr.mxu0 0.0
  %57 = vmatpush1.msra.mxu0 0.0
  %58 = vmatprep.subr.mxu0 0.0
  %59 = vmatpush1.msra.mxu0 0.0
  %60 = vmatprep.subr.mxu0 0.0
  %61 = vmatpush1.msra.mxu0 0.0
  %62 = vmatprep.subr.mxu0 0.0
  %63 = vmatpush1.msra.mxu0 0.0
  %64 = vmatprep.subr.mxu0 0.0
  %65 = vmatpush1.msra.mxu0 0.0
  %66 = vmatprep.subr.mxu0 0.0
  %67 = vmatpush1.msra.mxu0 0.0
  %68 = vmatprep.subr.mxu0 0.0
  %69 = vmatpush1.msra.mxu0 0.0
  %70 = vmatprep.subr.mxu0 0.0
  %71 = vmatpush1.msra.mxu0 0.0
  %72 = vmatprep.subr.mxu0 0.0
  %73 = vmatpush1.msra.mxu0 0.0
  %74 = vmatprep.subr.mxu0 0.0
  %75 = vmatpush1.msra.mxu0 0.0
  %76 = vmatprep.subr.mxu0 0.0
  %77 = vmatpush1.msra.mxu0 0.0
  %78 = vmatprep.subr.mxu0 0.0
  %79 = vmatpush1.msra.mxu0 0.0
  %80 = vmatprep.subr.mxu0 0.0
  %81 = vmatpush1.msra.mxu0 0.0
  %82 = vmatprep.subr.mxu0 0.0
  %83 = vmatpush1.msra.mxu0 0.0
  %84 = vmatprep.subr.mxu0 0.0
  %85 = vmatpush1.msra.mxu0 0.0
  %86 = vmatprep.subr.mxu0 0.0
  %87 = vmatpush1.msra.mxu0 0.0
  %88 = vmatprep.subr.mxu0 0.0
  %89 = vmatpush1.msra.mxu0 0.0
  %90 = vmatprep.subr.mxu0 0.0
  %91 = vmatpush1.msra.mxu0 0.0
  %92 = vmatprep.subr.mxu0 0.0
  %93 = vmatpush1.msra.mxu0 0.0
  %94 = vmatprep.subr.mxu0 0.0
  %95 = vmatpush1.msra.mxu0 0.0
  %96 = vmatprep.subr.mxu0 0.0
  %97 = vmatpush1.msra.mxu0 0.0
  %98 = vmatprep.subr.mxu0 0.0
  %99 = vmatpush1.msra.mxu0 0.0
  %100 = vmatprep.subr.mxu0 0.0
  %101 = vmatpush1.msra.mxu0 0.0
  %102 = vmatprep.mubr.f32.mxu0 0.0
  %103 = vmatmul.mubr.f32.gmra.mrb[0].mxu0 %v32
  %v104 = vpop.f32.mrb[0].mxu0
  %v105 = vadd.f32 %v28, %v104
  %v106 = vpop.f32.mrb[0].mxu0
  %107 = vdwg.mxu0
  %v108 = vmax.f32 %v105, 0.0
  %v109 = vld [vmem:[%s3] sm:$0xff]
  %v110 = vld [vmem:[%s3 + $0x8] sm:$0xff]
  %v111 = vld [vmem:[%s3 + $0x10] sm:$0xff]
  %v112 = vld [vmem:[%s3 + $0x18] sm:$0xff]
  %v113 = vld [vmem:[%s3 + $0x20] sm:$0xff]
  %v114 = vld [vmem:[%s3 + $0x28] sm:$0xff]
  %v115 = vld [vmem:[%s3 + $0x30] sm:$0xff]
  %v116 = vld [vmem:[%s3 + $0x38] sm:$0xff]
  %v117 = vld [vmem:[%s3 + $0x40] sm:$0xff]
  %v118 = vld [vmem:[%s3 + $0x48] sm:$0xff]
  %v119 = vld [vmem:[%s3 + $0x50] sm:$0xff]
  %v120 = vld [vmem:[%s3 + $0x58] sm:$0xff]
  %v121 = vld [vmem:[%s3 + $0x60] sm:$0xf]
  %v122 = vld [vmem:[%s4] sm:$0x1]
  %v124 = vlaneseq
  %v125 = vshrl.u32 %v124, 7
  %v126 = vsub.s32 0, %v125
  %v127 = vrot.slane %v122, %v126
  %vm129 = vcmask 818176
  %v131 = vsel %vm129, %v108, 0
  %vm133 = vcmask 1043456
  %v135 = vsel %vm133, %v121, 0
  %137 = vmatprep.subr.mxu0 0.0
  %138 = vmatpush1.msra.mxu0 %v109
  %139 = vmatprep.subr.mxu0 0.0
  %140 = vmatpush1.msra.mxu0 %v110
  %141 = vmatprep.subr.mxu0 0.0
  %142 = vmatpush1.msra.mxu0 %v111
  %143 = vmatprep.subr.mxu0 0.0
  %144 = vmatpush1.msra.mxu0 %v112
  %145 = vmatprep.subr.mxu0 0.0
  %146 = vmatpush1.msra.mxu0 %v113
  %147 = vmatprep.subr.mxu0 0.0
  %148 = vmatpush1.msra.mxu0 %v114
  %149 = vmatprep.subr.mxu0 0.0
  %150 = vmatpush1.msra.mxu0 %v115
  %151 = vmatprep.subr.mxu0 0.0
  %152 = vmatpush1.msra.mxu0 %v116
  %153 = vmatprep.subr.mxu0 0.0
  %154 = vmatpush1.msra.mxu0 %v117
  %155 = vmatprep.subr.mxu0 0.0
  %156 = vmatpush1.msra.mxu0 %v118
  %157 = vmatprep.subr.mxu0 0.0
  %158 = vmatpush1.msra.mxu0 %v119
  %159 = vmatprep.subr.mxu0 0.0
  %160 = vmatpush1.msra.mxu0 %v120
  %161 = vmatprep.subr.mxu0 0.0
  %162 = vmatpush1.msra.mxu0 %v135
  %163 = vmatprep.subr.mxu0 0.0
  %164 = vmatpush1.msra.mxu0 0.0
  %165 = vmatprep.subr.mxu0 0.0
  %166 = vmatpush1.msra.mxu0 0.0
  %167 = vmatprep.subr.mxu0 0.0
  %168 = vmatpush1.msra.mxu0 0.0
  %169 = vmatprep.subr.mxu0 0.0
  %170 = vmatpush1.msra.mxu0 0.0
  %171 = vmatprep.subr.mxu0 0.0
  %172 = vmatpush1.msra.mxu0 0.0
  %173 = vmatprep.subr.mxu0 0.0
  %174 = vmatpush1.msra.mxu0 0.0
  %175 = vmatprep.subr.mxu0 0.0
  %176 = vmatpush1.msra.mxu0 0.0
  %177 = vmatprep.subr.mxu0 0.0
  %178 = vmatpush1.msra.mxu0 0.0
  %179 = vmatprep.subr.mxu0 0.0
  %180 = vmatpush1.msra.mxu0 0.0
  %181 = vmatprep.subr.mxu0 0.0
  %182 = vmatpush1.msra.mxu0 0.0
  %183 = vmatprep.subr.mxu0 0.0
  %184 = vmatpush1.msra.mxu0 0.0
  %185 = vmatprep.subr.mxu0 0.0
  %186 = vmatpush1.msra.mxu0 0.0
  %187 = vmatprep.subr.mxu0 0.0
  %188 = vmatpush1.msra.mxu0 0.0
  %189 = vmatprep.subr.mxu0 0.0
  %190 = vmatpush1.msra.mxu0 0.0
  %191 = vmatprep.subr.mxu0 0.0
  %192 = vmatpush1.msra.mxu0 0.0
  %193 = vmatprep.subr.mxu0 0.0
  %194 = vmatpush1.msra.mxu0 0.0
  %195 = vmatprep.subr.mxu0 0.0
  %196 = vmatpush1.msra.mxu0 0.0
  %197 = vmatprep.subr.mxu0 0.0
  %198 = vmatpush1.msra.mxu0 0.0
  %199 = vmatprep.subr.mxu0 0.0
  %200 = vmatpush1.msra.mxu0 0.0
  %201 = vmatprep.mubr.f32.mxu0 0.0
  %202 = vmatmul.mubr.f32.gmra.mrb[0].mxu0 %v131
  %v203 = vpop.f32.mrb[0].mxu0
  %v204 = vadd.f32 %v127, %v203
  %v205 = vpop.f32.mrb[0].mxu0
  %206 = vdwg.mxu0
  %208 = vrot.lane.b32.xlu0 %v204, 1
  %v209 = vpop.permute.xlu0 %208
  %v211 = vsub.f32 %v204, %v209
  %v212 = vand.u32 2147483647, %v211
  %v213 = vsub.f32 0.0, %v212
  %v214 = vmul.f32 %v213, 1.442695
  %v215 = vpow.pop %v214
  %v216 = vadd.f32 %v215, 1.0
  %v217 = vrcp.pop %v216
  %v218 = vmul.f32 1.0, %v217
  %v219 = vmul.f32 %v215, %v217
  %vm220 = vcmp.ge.f32.partialorder %v211, 0.0
  %v221 = vsel %vm220, %v218, %v219
  %v222 = vsub.f32 1.0, %v221
  %224 = vrot.lane.b32.xlu0 %v222, 127
  %v225 = vpop.permute.xlu0 %224
  %vm227 = vcmask 7168
  %v228 = vsel %vm227, %v225, %v221
  %vm229 = vcmask 15360
  %230 = vst.msk [vmem:[%s5] sm:$0xff] %vm229, %v228
  // Predicated region
  $region22: #{txtnet_forward.1} parent=0 // pred_check
    _
  $region23: #{txtnet_forward.1} parent=0 // pred_check_branch
    %232 = sbr.rel (0) target = $region25
  $region24: #{txtnet_forward.1} parent=0 // pred_region
    _
  $region25: #{txtnet_forward.1} parent=0 // pred_fallthru
    _
  // Predicated region
  $region26: #{txtnet_forward.1} parent=0 // pred_check
    _
  $region27: #{txtnet_forward.1} parent=0 // pred_check_branch
    %234 = sbr.rel (0) target = $region29
  $region28: #{txtnet_forward.1} parent=0 // pred_region
    _
  $region29: #{txtnet_forward.1} parent=0 // pred_fallthru
    _

</llo_original>
